<compile_context>
chip_gen: v6e
topology: v6e:2x2x1
jax: 0.10.0
libtpu: 0.0.40
codegen_flags: <defaults>
</compile_context>

<pallas_src>
import jax
import jax.numpy as jnp
from jax.experimental import pallas as pl
from jax.experimental.pallas import tpu as pltpu

B = 2
C, H, W = 4, 16, 16
IN_DIM = C * H * W            # 1024
FEAT_DIM = 128                # feature backbone output width
TIME_DIM = 8
TIME_APPEND_DIM = 256
CLS_HIDDEN = 256
OUT_DIM = 16
T2V_LIN = TIME_DIM // 4       # Time2Vec: first 2 columns linear, remaining 6 sine

BP = 8                        # batch padded to one f32 sublane tile
OUT_PAD = 128                 # lane-dense output width
XT_DIM = IN_DIM + 128         # packed [x_flat | t | zero pad] lane width (1152)
TBLK_W = CLS_HIDDEN + 128     # time-block lane width (384): 256 fold + 4 heads + pad


def _leaky(v):
    # nn.LeakyReLU() default negative_slope = 0.01 (leaky=True path of TimeReLU)
    return jnp.where(v > 0, v, 0.01 * v)


# ----------------------------------------------------------------------------- kernel
def _gi_kernel(xt_ref, w_f1_ref, w_c1f_ref, tblk_ref, slab_ref, w_c2_ref, out_ref):
    f32 = jnp.float32

    xt = xt_ref[...]                                  # (BP, XT_DIM)
    x = xt[:, :IN_DIM]                                # (BP, 1024)
    t = xt[:, IN_DIM:IN_DIM + 1]                      # (BP, 1)

    slab = slab_ref[...]                              # (16, 256)

    # ---- Time2Vec(1, TIME_DIM): cols < T2V_LIN linear, remainder sine ----
    z = t * slab[10:11, 0:TIME_DIM] + slab[11:12, 0:TIME_DIM]        # (BP, 8)
    col = jax.lax.broadcasted_iota(jnp.int32, z.shape, 1)
    time_v = jnp.where(col < T2V_LIN, z, jnp.sin(z))                 # (BP, 8)

    # ---- all time_v-side projections in ONE dot:
    #   lanes [0:256)   -> time_fc folded through fc_1's time columns (+ bias fold)
    #   lanes [256:260) -> the four TimeReLU scalar heads (pre-activation)
    tblk = tblk_ref[...]                              # (16, 384)
    tb = (jnp.dot(time_v, tblk[0:TIME_DIM, :], preferred_element_type=f32)
          + tblk[TIME_DIM:TIME_DIM + 1, :])           # (BP, 384)
    c1_time = tb[:, 0:CLS_HIDDEN]                     # (BP, 256)
    h = _leaky(tb[:, CLS_HIDDEN:CLS_HIDDEN + 4])      # (BP, 4): [ftr, ftra, ctr, ctra]

    # ---- feature backbone: Linear(IN_DIM, FEAT_DIM) -> TimeReLU ----
    f1 = (jnp.dot(x, w_f1_ref[...], preferred_element_type=f32)
          + slab[4:5, 0:FEAT_DIM])                    # (BP, 128)
    thr_f = h[:, 0:1] * slab[5:6, 0:FEAT_DIM] + slab[6:7, 0:FEAT_DIM]
    alp_f = h[:, 1:2] * slab[7:8, 0:FEAT_DIM] + slab[8:9, 0:FEAT_DIM]
    feat = jnp.where(f1 > thr_f, f1 - thr_f, alp_f * (f1 - thr_f))

    # ---- classifier fc_1 on concat([feat, time_append]) with time_fc folded in ----
    c1 = jnp.dot(feat, w_c1f_ref[...], preferred_element_type=f32) + c1_time
    thr_c = h[:, 2:3] * slab[0:1, :] + slab[1:2, :]
    alp_c = h[:, 3:4] * slab[2:3, :] + slab[3:4, :]
    c1 = jnp.where(c1 > thr_c, c1 - thr_c, alp_c * (c1 - thr_c))     # (BP, 256)

    # ---- classifier fc_2, lane-dense (padded to 128 output lanes) ----
    out_ref[...] = (jnp.dot(c1, w_c2_ref[...], preferred_element_type=f32)
                    + slab[9:10, 0:OUT_PAD])


# ------------------------------------------------------------------- parameter packing
def pack_params(p):
    """Fold time_fc into fc_1 and pack all small tensors into aligned slabs."""
    f32 = jnp.float32
    packed = {"w_f1": p["w_f1"].astype(f32),          # (1024, 128)
              "w_c1f": p["w_c1f"].astype(f32)}        # (128, 256)

    # Exact fold: time_append @ w_c1t = time_v @ (w_tfc @ w_c1t) + b_tfc @ w_c1t
    w_c1t_fold = p["w_tfc"] @ p["w_c1t"]                              # (8, 256)
    b_c1_fold = p["b_tfc"] @ p["w_c1t"] + p["b_c1"]                   # (1, 256)

    # Stack the four TimeReLU (TIME_DIM -> 1) heads into a (8, 4) matrix.
    w_heads = jnp.concatenate(
        [p["w_ftr0"].T, p["w_ftra0"].T, p["w_ctr0"].T, p["w_ctra0"].T], axis=1)   # (8, 4)
    b_heads = jnp.concatenate(
        [p["b_ftr0"], p["b_ftra0"], p["b_ctr0"], p["b_ctra0"]], axis=1)           # (1, 4)

    tblk = jnp.zeros((16, TBLK_W), f32)                               # (16, 384)
    tblk = tblk.at[0:TIME_DIM, 0:CLS_HIDDEN].set(w_c1t_fold)
    tblk = tblk.at[0:TIME_DIM, CLS_HIDDEN:CLS_HIDDEN + 4].set(w_heads)
    tblk = tblk.at[TIME_DIM, 0:CLS_HIDDEN].set(b_c1_fold[0])
    tblk = tblk.at[TIME_DIM, CLS_HIDDEN:CLS_HIDDEN + 4].set(b_heads[0])
    packed["tblk"] = tblk

    slab = jnp.zeros((16, CLS_HIDDEN), f32)                           # (16, 256)
    slab = slab.at[0, :].set(p["w_ctr1"][0])
    slab = slab.at[1, :].set(p["b_ctr1"][0])
    slab = slab.at[2, :].set(p["w_ctra1"][0])
    slab = slab.at[3, :].set(p["b_ctra1"][0])
    slab = slab.at[4, 0:FEAT_DIM].set(p["b_f1"][0])
    slab = slab.at[5, 0:FEAT_DIM].set(p["w_ftr1"][0])
    slab = slab.at[6, 0:FEAT_DIM].set(p["b_ftr1"][0])
    slab = slab.at[7, 0:FEAT_DIM].set(p["w_ftra1"][0])
    slab = slab.at[8, 0:FEAT_DIM].set(p["b_ftra1"][0])
    slab = slab.at[9, 0:OUT_DIM].set(p["b_c2"][0])                    # zero-padded to 128
    slab = slab.at[10, 0:TIME_DIM].set(p["w_t2v"][0])
    slab = slab.at[11, 0:TIME_DIM].set(p["b_t2v"][0])
    packed["slab"] = slab

    w_c2p = jnp.zeros((CLS_HIDDEN, OUT_PAD), f32)
    w_c2p = w_c2p.at[:, 0:OUT_DIM].set(p["w_c2"])
    packed["w_c2p"] = w_c2p
    return packed


# ------------------------------------------------------------------------------ wrapper
def wrapped_gi_network(x, t, packed):
    """x: (B, C, H, W) NCHW float32; t: (B, 1) float32. Returns (B, OUT_DIM)."""
    b = x.shape[0]
    x_flat = x.reshape(b, -1).astype(jnp.float32)

    # Pack x and t into one sublane/lane-aligned slab (8, 1152): one DMA instead of two.
    xt = jnp.zeros((BP, XT_DIM), jnp.float32)
    xt = xt.at[:b, :IN_DIM].set(x_flat)
    xt = xt.at[:b, IN_DIM:IN_DIM + 1].set(t.astype(jnp.float32))

    vmem = pl.BlockSpec(memory_space=pltpu.MemorySpace.VMEM)
    out = pl.pallas_call(
        _gi_kernel,
        out_shape=jax.ShapeDtypeStruct((BP, OUT_PAD), jnp.float32),
        in_specs=[vmem] * 6,
        out_specs=vmem,
        compiler_params=pltpu.CompilerParams(vmem_limit_bytes=16 << 20),
    )(xt, packed["w_f1"], packed["w_c1f"], packed["tblk"],
      packed["slab"], packed["w_c2p"])

    return out[:b, :OUT_DIM]


# ---------------- deterministic parameter construction (synthetic, no checkpoint) ----------------
def _linear(key, fan_in, fan_out):
    """PyTorch nn.Linear-style U(-1/sqrt(fan_in), 1/sqrt(fan_in)); weight stored (in, out)."""
    kw, kb = jax.random.split(key)
    bound = 1.0 / (fan_in ** 0.5)
    w = jax.random.uniform(kw, (fan_in, fan_out), jnp.float32, -bound, bound)
    b = jax.random.uniform(kb, (1, fan_out), jnp.float32, -bound, bound)
    return w, b


def init_params(key):
    ks = jax.random.split(key, 12)
    p = {}
    # Time2Vec(1, 8): model_0 = Linear(1, 2), model_1 = Linear(1, 6); concat on out dim.
    w_lin, b_lin = _linear(ks[0], 1, T2V_LIN)
    w_sin, b_sin = _linear(ks[1], 1, TIME_DIM - T2V_LIN)
    p["w_t2v"] = jnp.concatenate([w_lin, w_sin], axis=1)       # (1, TIME_DIM)
    p["b_t2v"] = jnp.concatenate([b_lin, b_sin], axis=1)       # (1, TIME_DIM)

    # Feature backbone Linear(IN_DIM, FEAT_DIM)
    p["w_f1"], p["b_f1"] = _linear(ks[2], IN_DIM, FEAT_DIM)

    # Feature TimeReLU (lazy-init hook resolved statically: data_shape = (FEAT_DIM,))
    w, b = _linear(ks[3], TIME_DIM, 1)
    p["w_ftr0"], p["b_ftr0"] = w.T, b                          # (1, 8), (1, 1)
    p["w_ftr1"], p["b_ftr1"] = _linear(ks[4], 1, FEAT_DIM)     # (1, 128)
    w, b = _linear(ks[5], TIME_DIM, 1)
    p["w_ftra0"], p["b_ftra0"] = w.T, b
    p["w_ftra1"], p["b_ftra1"] = _linear(ks[6], 1, FEAT_DIM)

    # time_fc: Linear(TIME_DIM, TIME_APPEND_DIM)
    p["w_tfc"], p["b_tfc"] = _linear(ks[7], TIME_DIM, TIME_APPEND_DIM)

    # Classifier fc_1: Linear(FEAT_DIM + TIME_APPEND_DIM, CLS_HIDDEN), split for the concat
    w_c1, b_c1 = _linear(ks[8], FEAT_DIM + TIME_APPEND_DIM, CLS_HIDDEN)
    p["w_c1f"], p["w_c1t"], p["b_c1"] = w_c1[:FEAT_DIM], w_c1[FEAT_DIM:], b_c1

    # Classifier TimeReLU (data_shape = (CLS_HIDDEN,))
    w, b = _linear(ks[9], TIME_DIM, 1)
    p["w_ctr0"], p["b_ctr0"] = w.T, b
    p["w_ctr1"], p["b_ctr1"] = _linear(ks[10], 1, CLS_HIDDEN)
    kk = jax.random.split(ks[11], 3)
    w, b = _linear(kk[0], TIME_DIM, 1)
    p["w_ctra0"], p["b_ctra0"] = w.T, b
    p["w_ctra1"], p["b_ctra1"] = _linear(kk[1], 1, CLS_HIDDEN)

    # Classifier fc_2: Linear(CLS_HIDDEN, OUT_DIM)
    p["w_c2"], p["b_c2"] = _linear(kk[2], CLS_HIDDEN, OUT_DIM)
    return p


# ---------------- pure-JAX reference (original un-folded math, run through XLA) ----------------
def _timerelu(x, time_v, w0, b0, w1, b1, wa0, ba0, wa1, ba1):
    h = _leaky(jnp.sum(time_v * w0, axis=1, keepdims=True) + b0)
    thr = h * w1 + b1
    ha = _leaky(jnp.sum(time_v * wa0, axis=1, keepdims=True) + ba0)
    alpha = ha * wa1 + ba1
    return jnp.where(x > thr, x - thr, alpha * (x - thr))


def reference_forward(x, t, p):
    x_flat = x.reshape(x.shape[0], -1)
    z = t * p["w_t2v"] + p["b_t2v"]
    col = jnp.arange(TIME_DIM)[None, :]
    time_v = jnp.where(col < T2V_LIN, z, jnp.sin(z))
    f1 = x_flat @ p["w_f1"] + p["b_f1"]
    feat = _timerelu(f1, time_v, p["w_ftr0"], p["b_ftr0"], p["w_ftr1"], p["b_ftr1"],
                     p["w_ftra0"], p["b_ftra0"], p["w_ftra1"], p["b_ftra1"])
    time_append = time_v @ p["w_tfc"] + p["b_tfc"]
    cat = jnp.concatenate([feat, time_append], axis=-1)
    w_c1 = jnp.concatenate([p["w_c1f"], p["w_c1t"]], axis=0)
    c1 = cat @ w_c1 + p["b_c1"]
    c1 = _timerelu(c1, time_v, p["w_ctr0"], p["b_ctr0"], p["w_ctr1"], p["b_ctr1"],
                   p["w_ctra0"], p["b_ctra0"], p["w_ctra1"], p["b_ctra1"])
    return c1 @ p["w_c2"] + p["b_c2"]


if __name__ == "__main__":
    key = jax.random.PRNGKey(0)
    k_param, k_x, k_t = jax.random.split(key, 3)
    params = init_params(k_param)
    packed = pack_params(params)

    x = jax.random.normal(k_x, (B, C, H, W), jnp.float32)            # NCHW input
    t = jax.random.uniform(k_t, (B, 1), jnp.float32)                 # per-sample time scalar

    out = jax.block_until_ready(wrapped_gi_network(x, t, packed))
    ref = jax.block_until_ready(reference_forward(x, t, params))

    assert out.shape == (B, OUT_DIM), out.shape
    assert jnp.allclose(out, ref, rtol=5e-3, atol=5e-3), float(jnp.max(jnp.abs(out - ref)))
    print("KERNEL_OK")
</pallas_src>

<mosaic_0001>
module attributes {stable_mosaic.version = 11 : i64} {
  func.func @_gi_kernel(%arg0: memref<8x1152xf32, #tpu.memory_space<vmem>>, %arg1: memref<1024x128xf32, #tpu.memory_space<vmem>>, %arg2: memref<128x256xf32, #tpu.memory_space<vmem>>, %arg3: memref<16x384xf32, #tpu.memory_space<vmem>>, %arg4: memref<16x256xf32, #tpu.memory_space<vmem>>, %arg5: memref<256x128xf32, #tpu.memory_space<vmem>>, %arg6: memref<8x128xf32, #tpu.memory_space<vmem>>) attributes {dimension_semantics = [], scalar_prefetch = 0 : i64, scratch_operands = 0 : i64, tpu.core_type = #tpu.core_type<tc>} {
    %c0 = arith.constant 0 : index
    %c0_0 = arith.constant 0 : index
    %0 = vector.load %arg0[%c0, %c0_0] : memref<8x1152xf32, #tpu.memory_space<vmem>>, vector<8x1152xf32>
    %1 = vector.extract_strided_slice %0 {offsets = [0, 0], sizes = [8, 1024], strides = [1, 1]} : vector<8x1152xf32> to vector<8x1024xf32>
    %2 = vector.extract_strided_slice %0 {offsets = [0, 1024], sizes = [8, 1], strides = [1, 1]} : vector<8x1152xf32> to vector<8x1xf32>
    %c0_1 = arith.constant 0 : index
    %c0_2 = arith.constant 0 : index
    %3 = vector.load %arg4[%c0_1, %c0_2] : memref<16x256xf32, #tpu.memory_space<vmem>>, vector<16x256xf32>
    %4 = vector.extract_strided_slice %3 {offsets = [10, 0], sizes = [1, 8], strides = [1, 1]} : vector<16x256xf32> to vector<1x8xf32>
    %5 = vector.broadcast %2 : vector<8x1xf32> to vector<8x8xf32>
    %6 = vector.broadcast %4 : vector<1x8xf32> to vector<8x8xf32>
    %7 = arith.mulf %5, %6 : vector<8x8xf32>
    %8 = vector.extract_strided_slice %3 {offsets = [11, 0], sizes = [1, 8], strides = [1, 1]} : vector<16x256xf32> to vector<1x8xf32>
    %9 = vector.broadcast %8 : vector<1x8xf32> to vector<8x8xf32>
    %10 = arith.addf %7, %9 : vector<8x8xf32>
    %11 = tpu.iota {dimensions = array<i32: 1>} : vector<8x8xi32>
    %c2_i32 = arith.constant 2 : i32
    %12 = vector.broadcast %c2_i32 : i32 to vector<8x8xi32>
    %13 = arith.cmpi slt, %11, %12 : vector<8x8xi32>
    %14 = math.sin %10 : vector<8x8xf32>
    %15 = arith.select %13, %10, %14 : vector<8x8xi1>, vector<8x8xf32>
    %c0_3 = arith.constant 0 : index
    %c0_4 = arith.constant 0 : index
    %16 = vector.load %arg3[%c0_3, %c0_4] : memref<16x384xf32, #tpu.memory_space<vmem>>, vector<16x384xf32>
    %17 = vector.extract_strided_slice %16 {offsets = [0, 0], sizes = [8, 384], strides = [1, 1]} : vector<16x384xf32> to vector<8x384xf32>
    %cst = arith.constant dense<0.000000e+00> : vector<8x384xf32>
    %18 = tpu.matmul %15, %17, %cst {dimension_numbers = #tpu.dot_dimension_numbers<[1], [0], [0], [1], [0, 0, 1, 1], [], []>} : vector<8x8xf32>, vector<8x384xf32>, vector<8x384xf32> -> vector<8x384xf32>
    %19 = vector.extract_strided_slice %16 {offsets = [8, 0], sizes = [1, 384], strides = [1, 1]} : vector<16x384xf32> to vector<1x384xf32>
    %20 = vector.broadcast %19 : vector<1x384xf32> to vector<8x384xf32>
    %21 = arith.addf %18, %20 : vector<8x384xf32>
    %22 = vector.extract_strided_slice %21 {offsets = [0, 0], sizes = [8, 256], strides = [1, 1]} : vector<8x384xf32> to vector<8x256xf32>
    %23 = vector.extract_strided_slice %21 {offsets = [0, 256], sizes = [8, 4], strides = [1, 1]} : vector<8x384xf32> to vector<8x4xf32>
    %cst_5 = arith.constant 0.000000e+00 : f32
    %24 = vector.broadcast %cst_5 : f32 to vector<8x4xf32>
    %25 = arith.cmpf ogt, %23, %24 : vector<8x4xf32>
    %cst_6 = arith.constant 0.00999999977 : f32
    %26 = vector.broadcast %cst_6 : f32 to vector<8x4xf32>
    %27 = arith.mulf %26, %23 : vector<8x4xf32>
    %28 = arith.select %25, %23, %27 : vector<8x4xi1>, vector<8x4xf32>
    %c0_7 = arith.constant 0 : index
    %c0_8 = arith.constant 0 : index
    %29 = vector.load %arg1[%c0_7, %c0_8] : memref<1024x128xf32, #tpu.memory_space<vmem>>, vector<1024x128xf32>
    %cst_9 = arith.constant dense<0.000000e+00> : vector<8x128xf32>
    %30 = tpu.matmul %1, %29, %cst_9 {dimension_numbers = #tpu.dot_dimension_numbers<[1], [0], [0], [1], [0, 0, 1, 1], [], []>} : vector<8x1024xf32>, vector<1024x128xf32>, vector<8x128xf32> -> vector<8x128xf32>
    %31 = vector.extract_strided_slice %3 {offsets = [4, 0], sizes = [1, 128], strides = [1, 1]} : vector<16x256xf32> to vector<1x128xf32>
    %32 = vector.broadcast %31 : vector<1x128xf32> to vector<8x128xf32>
    %33 = arith.addf %30, %32 : vector<8x128xf32>
    %34 = vector.extract_strided_slice %28 {offsets = [0, 0], sizes = [8, 1], strides = [1, 1]} : vector<8x4xf32> to vector<8x1xf32>
    %35 = vector.extract_strided_slice %3 {offsets = [5, 0], sizes = [1, 128], strides = [1, 1]} : vector<16x256xf32> to vector<1x128xf32>
    %36 = vector.broadcast %34 : vector<8x1xf32> to vector<8x128xf32>
    %37 = vector.broadcast %35 : vector<1x128xf32> to vector<8x128xf32>
    %38 = arith.mulf %36, %37 : vector<8x128xf32>
    %39 = vector.extract_strided_slice %3 {offsets = [6, 0], sizes = [1, 128], strides = [1, 1]} : vector<16x256xf32> to vector<1x128xf32>
    %40 = vector.broadcast %39 : vector<1x128xf32> to vector<8x128xf32>
    %41 = arith.addf %38, %40 : vector<8x128xf32>
    %42 = vector.extract_strided_slice %28 {offsets = [0, 1], sizes = [8, 1], strides = [1, 1]} : vector<8x4xf32> to vector<8x1xf32>
    %43 = vector.extract_strided_slice %3 {offsets = [7, 0], sizes = [1, 128], strides = [1, 1]} : vector<16x256xf32> to vector<1x128xf32>
    %44 = vector.broadcast %42 : vector<8x1xf32> to vector<8x128xf32>
    %45 = vector.broadcast %43 : vector<1x128xf32> to vector<8x128xf32>
    %46 = arith.mulf %44, %45 : vector<8x128xf32>
    %47 = vector.extract_strided_slice %3 {offsets = [8, 0], sizes = [1, 128], strides = [1, 1]} : vector<16x256xf32> to vector<1x128xf32>
    %48 = vector.broadcast %47 : vector<1x128xf32> to vector<8x128xf32>
    %49 = arith.addf %46, %48 : vector<8x128xf32>
    %50 = arith.cmpf ogt, %33, %41 : vector<8x128xf32>
    %51 = arith.subf %33, %41 : vector<8x128xf32>
    %52 = arith.subf %33, %41 : vector<8x128xf32>
    %53 = arith.mulf %49, %52 : vector<8x128xf32>
    %54 = arith.select %50, %51, %53 : vector<8x128xi1>, vector<8x128xf32>
    %c0_10 = arith.constant 0 : index
    %c0_11 = arith.constant 0 : index
    %55 = vector.load %arg2[%c0_10, %c0_11] : memref<128x256xf32, #tpu.memory_space<vmem>>, vector<128x256xf32>
    %cst_12 = arith.constant dense<0.000000e+00> : vector<8x256xf32>
    %56 = tpu.matmul %54, %55, %cst_12 {dimension_numbers = #tpu.dot_dimension_numbers<[1], [0], [0], [1], [0, 0, 1, 1], [], []>} : vector<8x128xf32>, vector<128x256xf32>, vector<8x256xf32> -> vector<8x256xf32>
    %57 = arith.addf %56, %22 : vector<8x256xf32>
    %58 = vector.extract_strided_slice %28 {offsets = [0, 2], sizes = [8, 1], strides = [1, 1]} : vector<8x4xf32> to vector<8x1xf32>
    %59 = vector.extract_strided_slice %3 {offsets = [0, 0], sizes = [1, 256], strides = [1, 1]} : vector<16x256xf32> to vector<1x256xf32>
    %60 = vector.broadcast %58 : vector<8x1xf32> to vector<8x256xf32>
    %61 = vector.broadcast %59 : vector<1x256xf32> to vector<8x256xf32>
    %62 = arith.mulf %60, %61 : vector<8x256xf32>
    %63 = vector.extract_strided_slice %3 {offsets = [1, 0], sizes = [1, 256], strides = [1, 1]} : vector<16x256xf32> to vector<1x256xf32>
    %64 = vector.broadcast %63 : vector<1x256xf32> to vector<8x256xf32>
    %65 = arith.addf %62, %64 : vector<8x256xf32>
    %66 = vector.extract_strided_slice %28 {offsets = [0, 3], sizes = [8, 1], strides = [1, 1]} : vector<8x4xf32> to vector<8x1xf32>
    %67 = vector.extract_strided_slice %3 {offsets = [2, 0], sizes = [1, 256], strides = [1, 1]} : vector<16x256xf32> to vector<1x256xf32>
    %68 = vector.broadcast %66 : vector<8x1xf32> to vector<8x256xf32>
    %69 = vector.broadcast %67 : vector<1x256xf32> to vector<8x256xf32>
    %70 = arith.mulf %68, %69 : vector<8x256xf32>
    %71 = vector.extract_strided_slice %3 {offsets = [3, 0], sizes = [1, 256], strides = [1, 1]} : vector<16x256xf32> to vector<1x256xf32>
    %72 = vector.broadcast %71 : vector<1x256xf32> to vector<8x256xf32>
    %73 = arith.addf %70, %72 : vector<8x256xf32>
    %74 = arith.cmpf ogt, %57, %65 : vector<8x256xf32>
    %75 = arith.subf %57, %65 : vector<8x256xf32>
    %76 = arith.subf %57, %65 : vector<8x256xf32>
    %77 = arith.mulf %73, %76 : vector<8x256xf32>
    %78 = arith.select %74, %75, %77 : vector<8x256xi1>, vector<8x256xf32>
    %c0_13 = arith.constant 0 : index
    %c0_14 = arith.constant 0 : index
    %79 = vector.load %arg5[%c0_13, %c0_14] : memref<256x128xf32, #tpu.memory_space<vmem>>, vector<256x128xf32>
    %cst_15 = arith.constant dense<0.000000e+00> : vector<8x128xf32>
    %80 = tpu.matmul %78, %79, %cst_15 {dimension_numbers = #tpu.dot_dimension_numbers<[1], [0], [0], [1], [0, 0, 1, 1], [], []>} : vector<8x256xf32>, vector<256x128xf32>, vector<8x128xf32> -> vector<8x128xf32>
    %81 = vector.extract_strided_slice %3 {offsets = [9, 0], sizes = [1, 128], strides = [1, 1]} : vector<16x256xf32> to vector<1x128xf32>
    %82 = vector.broadcast %81 : vector<1x128xf32> to vector<8x128xf32>
    %83 = arith.addf %80, %82 : vector<8x128xf32>
    %c0_16 = arith.constant 0 : index
    %c0_17 = arith.constant 0 : index
    %84 = vector.load %arg6[%c0_16, %c0_17] : memref<8x128xf32, #tpu.memory_space<vmem>>, vector<8x128xf32>
    tpu.vector_store %arg6[%c0_16, %c0_17], %83 {strides = array<i32>} : memref<8x128xf32, #tpu.memory_space<vmem>>, vector<8x128xf32>,
    return
  }
}

</mosaic_0001>

<llo_original>
// kernel: tpu_custom_call.1
$region0: #{tpu_custom_call.1}
  #allocation0 [shape = 'u32[]', space=smem, size = 0x4, offset = 0x4, fixed_abs, tag = 'smem constant byte address 0x4 - core index']
  #allocation1 [shape = 'u32[144,128]{1,0:T(1,128)}', space=vmem, size = 0x12000, scoped, tag = 'internal scratch']
  %s0 = inlined_call_operand.hbm [shape: f32[8,1152], index: 0, kind: input, shape index: {}]
  %s1 = inlined_call_operand.hbm [shape: f32[1024,128], index: 1, kind: input, shape index: {}]
  %s2 = inlined_call_operand.hbm [shape: f32[128,256], index: 2, kind: input, shape index: {}]
  %s3 = inlined_call_operand.hbm [shape: f32[16,384], index: 3, kind: input, shape index: {}]
  %s4 = inlined_call_operand.hbm [shape: f32[16,256], index: 4, kind: input, shape index: {}]
  %s5 = inlined_call_operand.hbm [shape: f32[256,128], index: 5, kind: input, shape index: {}]
  %s6 = inlined_call_operand.hbm [shape: f32[8,128], index: 6, kind: output, shape index: {}]
  %s7 = sld [smem:[#allocation0]]
  $region58: #{tpu_custom_call.1} parent=0
    _
  %s9 = ssub.s32 1, %s7
  %s10 = scalar_select 0, %s9, %s7
  $region1: #{tpu_custom_call.1} parent=0
    #allocation2 [shape = 'u8[36864]{0}', space=vmem, size = 0x9000, scoped, tag = 'input window, operand 0, single buffered']
    #allocation3 [shape = 's32[1]{0}', space=sflag, size = 0x4, scoped, tag = 'scoped memory for tpu_custom_call.1']
    #allocation4 [shape = 's32[1]{0}', space=sflag, size = 0x4, scoped, tag = 'scoped memory for tpu_custom_call.1']
    #allocation5 [shape = 'u8[524288]{0}', space=vmem, size = 0x80000, scoped, tag = 'input window, operand 1, single buffered']
    #allocation6 [shape = 's32[1]{0}', space=sflag, size = 0x4, scoped, tag = 'scoped memory for tpu_custom_call.1']
    #allocation7 [shape = 'u8[131072]{0}', space=vmem, size = 0x20000, scoped, tag = 'input window, operand 2, single buffered']
    #allocation8 [shape = 'u8[24576]{0}', space=vmem, size = 0x6000, scoped, tag = 'input window, operand 3, single buffered']
    #allocation9 [shape = 's32[1]{0}', space=sflag, size = 0x4, scoped, tag = 'scoped memory for tpu_custom_call.1']
    #allocation10 [shape = 'u8[16384]{0}', space=vmem, size = 0x4000, scoped, tag = 'input window, operand 4, single buffered']
    #allocation11 [shape = 'u8[131072]{0}', space=vmem, size = 0x20000, scoped, tag = 'input window, operand 5, single buffered']
    #allocation12 [shape = 's32[1]{0}', space=sflag, size = 0x4, scoped, tag = 'scoped memory for tpu_custom_call.1']
    #allocation13 [shape = 'u8[4096]{0}', space=vmem, size = 0x1000, scoped, tag = 'output window, operand 0, single buffered']
    %11 = vsyncpa [#allocation3], 0
    %12 = vsyncpa [#allocation6], 0
    %13 = vsyncpa [#allocation9], 0
    %14 = vsyncpa [#allocation12], 0
    %15 = vsyncpa [#allocation4], 0
    // Predicated region
    $region2: #{tpu_custom_call.1} parent=1 // pred_check
      _
    $region3: #{tpu_custom_call.1} parent=1 // pred_check_branch
      %17 = sbr.rel (0) target = $region5
    $region4: #{tpu_custom_call.1} parent=1 // pred_region
      %s19 = ssub.s32 1152, 1152
      %20 = vsyncadd [#allocation3], %s19
      %s22 = sshll.u32 [#allocation2], 4
      %s23 = int_to_ptr.vmem [resolvable:$true] %s22
      %25 = dma.hbm_to_vmem [thread:$0]  %s0, 1152, %s23, [#allocation3]
    $region5: #{tpu_custom_call.1} parent=1 // pred_fallthru
      _
    // Predicated region
    $region6: #{tpu_custom_call.1} parent=1 // pred_check
      _
    $region7: #{tpu_custom_call.1} parent=1 // pred_check_branch
      %27 = sbr.rel (0) target = $region9
    $region8: #{tpu_custom_call.1} parent=1 // pred_region
      %s29 = ssub.s32 16384, 16384
      %30 = vsyncadd [#allocation6], %s29
      %s31 = sshll.u32 [#allocation5], 4
      %s32 = int_to_ptr.vmem [resolvable:$true] %s31
      %37 = dma.hbm_to_vmem [thread:$0]  %s1, 16384, %s32, [#allocation6], 128, 128, 8
    $region9: #{tpu_custom_call.1} parent=1 // pred_fallthru
      _
    // Predicated region
    $region10: #{tpu_custom_call.1} parent=1 // pred_check
      _
    $region11: #{tpu_custom_call.1} parent=1 // pred_check_branch
      %39 = sbr.rel (0) target = $region13
    $region12: #{tpu_custom_call.1} parent=1 // pred_region
      %s41 = ssub.s32 4096, 4096
      %42 = vsyncadd [#allocation6], %s41
      %s43 = sshll.u32 [#allocation7], 4
      %s44 = int_to_ptr.vmem [resolvable:$true] %s43
      %49 = dma.hbm_to_vmem [thread:$0]  %s2, 4096, %s44, [#allocation6], 256, 256, 16
    $region13: #{tpu_custom_call.1} parent=1 // pred_fallthru
      _
    // Predicated region
    $region14: #{tpu_custom_call.1} parent=1 // pred_check
      _
    $region15: #{tpu_custom_call.1} parent=1 // pred_check_branch
      %51 = sbr.rel (0) target = $region17
    $region16: #{tpu_custom_call.1} parent=1 // pred_region
      %s53 = ssub.s32 768, 768
      %54 = vsyncadd [#allocation9], %s53
      %s55 = sshll.u32 [#allocation8], 4
      %s56 = int_to_ptr.vmem [resolvable:$true] %s55
      %61 = dma.hbm_to_vmem [thread:$0]  %s3, 768, %s56, [#allocation9], 384, 384, 24
    $region17: #{tpu_custom_call.1} parent=1 // pred_fallthru
      _
    // Predicated region
    $region18: #{tpu_custom_call.1} parent=1 // pred_check
      _
    $region19: #{tpu_custom_call.1} parent=1 // pred_check_branch
      %63 = sbr.rel (0) target = $region21
    $region20: #{tpu_custom_call.1} parent=1 // pred_region
      %s65 = ssub.s32 512, 512
      %66 = vsyncadd [#allocation9], %s65
      %s67 = sshll.u32 [#allocation10], 4
      %s68 = int_to_ptr.vmem [resolvable:$true] %s67
      %73 = dma.hbm_to_vmem [thread:$0]  %s4, 512, %s68, [#allocation9], 256, 256, 16
    $region21: #{tpu_custom_call.1} parent=1 // pred_fallthru
      _
    // Predicated region
    $region22: #{tpu_custom_call.1} parent=1 // pred_check
      _
    $region23: #{tpu_custom_call.1} parent=1 // pred_check_branch
      %75 = sbr.rel (0) target = $region25
    $region24: #{tpu_custom_call.1} parent=1 // pred_region
      %s77 = ssub.s32 4096, 4096
      %78 = vsyncadd [#allocation12], %s77
      %s79 = sshll.u32 [#allocation11], 4
      %s80 = int_to_ptr.vmem [resolvable:$true] %s79
      %85 = dma.hbm_to_vmem [thread:$0]  %s5, 4096, %s80, [#allocation12], 128, 128, 8
    $region25: #{tpu_custom_call.1} parent=1 // pred_fallthru
      _
    // Predicated region
    $region26: #{tpu_custom_call.1} parent=1 // pred_check
      _
    $region27: #{tpu_custom_call.1} parent=1 // pred_check_branch
      %87 = sbr.rel (0) target = $region29
    $region28: #{tpu_custom_call.1} parent=1 // pred_region
      %88 = dma.done [#allocation3], 1152
    $region29: #{tpu_custom_call.1} parent=1 // pred_fallthru
      _
    // Predicated region
    $region30: #{tpu_custom_call.1} parent=1 // pred_check
      _
    $region31: #{tpu_custom_call.1} parent=1 // pred_check_branch
      %90 = sbr.rel (0) target = $region33
    $region32: #{tpu_custom_call.1} parent=1 // pred_region
      %91 = dma.done [#allocation6], 16384
    $region33: #{tpu_custom_call.1} parent=1 // pred_fallthru
      _
    // Predicated region
    $region34: #{tpu_custom_call.1} parent=1 // pred_check
      _
    $region35: #{tpu_custom_call.1} parent=1 // pred_check_branch
      %93 = sbr.rel (0) target = $region37
    $region36: #{tpu_custom_call.1} parent=1 // pred_region
      %94 = dma.done [#allocation6], 4096
    $region37: #{tpu_custom_call.1} parent=1 // pred_fallthru
      _
    // Predicated region
    $region38: #{tpu_custom_call.1} parent=1 // pred_check
      _
    $region39: #{tpu_custom_call.1} parent=1 // pred_check_branch
      %96 = sbr.rel (0) target = $region41
    $region40: #{tpu_custom_call.1} parent=1 // pred_region
      %97 = dma.done [#allocation9], 768
    $region41: #{tpu_custom_call.1} parent=1 // pred_fallthru
      _
    // Predicated region
    $region42: #{tpu_custom_call.1} parent=1 // pred_check
      _
    $region43: #{tpu_custom_call.1} parent=1 // pred_check_branch
      %99 = sbr.rel (0) target = $region45
    $region44: #{tpu_custom_call.1} parent=1 // pred_region
      %100 = dma.done [#allocation9], 512
    $region45: #{tpu_custom_call.1} parent=1 // pred_fallthru
      _
    // Predicated region
    $region46: #{tpu_custom_call.1} parent=1 // pred_check
      _
    $region47: #{tpu_custom_call.1} parent=1 // pred_check_branch
      %102 = sbr.rel (0) target = $region49
    $region48: #{tpu_custom_call.1} parent=1 // pred_region
      %103 = dma.done [#allocation12], 4096
    $region49: #{tpu_custom_call.1} parent=1 // pred_fallthru
      _
    %v104 = vld [vmem:[#allocation2] sm:$0xff]
    %v105 = vld [vmem:[#allocation2 + $0x8] sm:$0xff]
    %v106 = vld [vmem:[#allocation2 + $0x10] sm:$0xff]
    %v107 = vld [vmem:[#allocation2 + $0x18] sm:$0xff]
    %v108 = vld [vmem:[#allocation2 + $0x20] sm:$0xff]
    %v109 = vld [vmem:[#allocation2 + $0x28] sm:$0xff]
    %v110 = vld [vmem:[#allocation2 + $0x30] sm:$0xff]
    %v111 = vld [vmem:[#allocation2 + $0x38] sm:$0xff]
    %v112 = vld [vmem:[#allocation2 + $0x40] sm:$0xff]
    %v113 = vld [vmem:[#allocation10] sm:$0xff]
    %v114 = vld [vmem:[#allocation10 + $0x8] sm:$0xff]
    %v115 = vld [vmem:[#allocation10 + $0x10] sm:$0xff]
    %117 = vset.pattern.permute.xlu0 0
    %118 = vperm.xlu0 %117, %v112
    %v119 = vpop.permute.xlu0 %118
    %v121 = vlaneseq
    %v122 = vshrl.u32 %v121, 7
    %v123 = vsub.s32 2, %v122
    %v124 = vrot.slane %v115, %v123
    %v125 = vmul.f32 %v119, %v124
    %v126 = vlaneseq
    %v127 = vshrl.u32 %v126, 7
    %v128 = vsub.s32 3, %v127
    %v129 = vrot.slane %v115, %v128
    %v130 = vadd.f32 %v125, %v129
    %v131 = vlaneseq
    %v132 = vand.u32 %v131, 127
    %vm133 = vcmp.lt.s32.totalorder %v132, 2
    %v134 = vand.u32 2147483647, %v130
    %vm135 = vcmp.le.f32.partialorder %v134, 0.7853982
    %vm136 = vcmp.lt.s32.totalorder %v130, 0
    %v137 = vand.u32 %v130, 2139095040
    %v138 = vshrl.u32 %v137, 23
    %v139 = vsub.s32 %v138, 127
    %v140 = vand.u32 2147483647, %v130
    %v141 = vand.u32 %v140, 8388607
    %v142 = vor.u32 %v141, 8388608
    %v143 = vsub.s32 0, %v142
    %v144 = vadd.s32 %v139, 1
    %vm145 = vcmp.gt.s32.totalorder %v144, 0
    %v146 = vsel %vm145, %v144, 0
    %v147 = vshrl.u32 %v146, 5
    %v148 = vand.u32 %v146, 31
    %v149 = vsub.s32 32, %v148
    %v150 = vshrl.u32 683565275, %v149
    %v151 = vshll.u32 683565275, %v148
    %v152 = vshrl.u32 2475754826, %v149
    %v153 = vor.u32 %v151, %v152
    %v154 = vshll.u32 2475754826, %v148
    %v155 = vshrl.u32 2131351028, %v149
    %v156 = vor.u32 %v154, %v155
    %v157 = vshll.u32 2131351028, %v148
    %v158 = vshrl.u32 2102212464, %v149
    %v159 = vor.u32 %v157, %v158
    %v160 = vshll.u32 2102212464, %v148
    %v161 = vshrl.u32 920167782, %v149
    %v162 = vor.u32 %v160, %v161
    %v163 = vshll.u32 920167782, %v148
    %v164 = vshrl.u32 1326507024, %v149
    %v165 = vor.u32 %v163, %v164
    %vm166 = vcmp.lt.s32.totalorder %v147, 1
    %vm167 = vcmp.lt.s32.totalorder %v147, 2
    %vm168 = vcmp.lt.s32.totalorder %v147, 3
    %vm169 = vcmp.lt.s32.totalorder %v147, 4
    %v170 = vsel %vm166, %v150, %v153
    %v171 = vsel %vm169, %v159, 2102212464
    %v172 = vsel %vm168, %v156, %v171
    %v173 = vsel %vm167, %v170, %v172
    %v174 = vsel %vm166, %v153, %v156
    %v175 = vsel %vm169, %v162, 920167782
    %v176 = vsel %vm168, %v159, %v175
    %v177 = vsel %vm167, %v174, %v176
    %v178 = vsel %vm166, %v156, %v159
    %v179 = vsel %vm169, %v165, 1326507024
    %v180 = vsel %vm168, %v162, %v179
    %v181 = vsel %vm167, %v178, %v180
    %v182 = vshll.u32 %v142, 8
    %v183 = vmul.u32.u64.compose %v182, %v181
    %v184 = vextract.low.u32 %v183
    %v185 = vextract.high.u32 %v183
    %v186 = vmul.u32.u64.compose %v182, %v177
    %v187 = vextract.low.u32 %v186
    %v188 = vextract.high.u32 %v186
    %v189 = vmul.u32 %v182, %v173
    %v190 = vadd.s32 %v185, %v187
    %vm191 = vc.u32 %v185, %v187
    %v192 = vadd.s32 %v188, 1
    %v193 = vsel %vm191, %v192, %v188
    %v194 = vadd.s32 %v189, %v193
    %v195 = vadd.s32 %v194, 536870912
    %v196 = vshrl.u32 %v195, 30
    %v197 = vshll.u32 %v196, 30
    %v198 = vsub.s32 %v194, %v197
    %vm199 = vcmp.lt.s32.totalorder %v198, 0
    %v200 = vsub.s32 0, %v198
    %v201 = vsel %vm199, %v200, %v198
    %v202 = vclz %v201
    %v203 = vsub.s32 %v202, 2
    %vm204 = vcmp.gt.s32.totalorder 0, %v203
    %v205 = vsel %vm204, 0, %v203
    %v206 = vsub.s32 32, %v205
    %v207 = vshll.u32 %v198, %v205
    %v208 = vshrl.u32 %v190, %v206
    %v209 = vor.u32 %v207, %v208
    %v210 = vsub.s32 4294967266, %v205
    %v211 = vadd.s32 %v210, 127
    %v212 = vshll.u32 %v211, 23
    %v213 = vor.u32 4788187, %v212
    %v214 = vand.u32 2147483647, %v213
    %v216 = vcvt.s32.f32 %v209
    %v217 = vmul.f32 %v216, %v214
    %v218 = vxor.u32 %v217, 2147483648
    %v219 = vsel %vm136, %v218, %v217
    %v220 = vsub.s32 4, %v196
    %v221 = vsel %vm136, %v220, %v196
    %v222 = vsel %vm135, %v130, %v219
    %v223 = vsel %vm135, 0, %v221
    %v224 = vcosq.f32.pop %v222
    %v225 = vsinq.f32.pop %v222
    %vm226 = vweird.f32 %v130
    %v227 = vadd.s32 %v223, 3
    %v228 = vand.u32 %v227, 3
    %vm229 = vcmp.lt.s32.totalorder %v228, 2
    %vm230 = vcmp.eq.s32.totalorder %v228, 0
    %v231 = vxor.u32 %v225, 2147483648
    %v232 = vsel %vm230, %v224, %v231
    %vm233 = vcmp.eq.s32.totalorder %v228, 2
    %v234 = vxor.u32 %v224, 2147483648
    %v235 = vsel %vm233, %v234, %v225
    %v236 = vsel %vm229, %v232, %v235
    %v237 = vsel %vm226, nan, %v236
    %v238 = vsel %vm133, %v130, %v237
    %v239 = vld [vmem:[#allocation8] sm:$0xff]
    %v240 = vld [vmem:[#allocation8 + $0x8] sm:$0xff]
    %v241 = vld [vmem:[#allocation8 + $0x10] sm:$0xff]
    %v242 = vld [vmem:[#allocation8 + $0x18] sm:$0xff]
    %v243 = vld [vmem:[#allocation8 + $0x20] sm:$0xff]
    %v244 = vld [vmem:[#allocation8 + $0x28] sm:$0xff]
    %v245 = vlaneseq
    %v246 = vshrl.u32 %v245, 7
    %v247 = vsub.s32 0, %v246
    %v248 = vrot.slane %v242, %v247
    %v249 = vlaneseq
    %v250 = vshrl.u32 %v249, 7
    %v251 = vsub.s32 0, %v250
    %v252 = vrot.slane %v243, %v251
    %v253 = vlaneseq
    %v254 = vshrl.u32 %v253, 7
    %v255 = vsub.s32 0, %v254
    %v256 = vrot.slane %v244, %v255
    %vm257 = vcmask 64512
    %v259 = vsel %vm257, %v238, 0
    %261 = vmatprep.subr.mxu0 0.0
    %262 = vmatpush1.msra.mxu0 0.0
    %263 = vmatprep.subr.mxu0 0.0
    %264 = vmatpush1.msra.mxu0 0.0
    %265 = vmatprep.subr.mxu0 0.0
    %266 = vmatpush1.msra.mxu0 0.0
    %267 = vmatprep.subr.mxu0 0.0
    %268 = vmatpush1.msra.mxu0 0.0
    %269 = vmatprep.subr.mxu0 0.0
    %270 = vmatpush1.msra.mxu0 0.0
    %271 = vmatprep.subr.mxu0 0.0
    %272 = vmatpush1.msra.mxu0 0.0
    %273 = vmatprep.subr.mxu0 0.0
    %274 = vmatpush1.msra.mxu0 0.0
    %275 = vmatprep.subr.mxu0 0.0
    %276 = vmatpush1.msra.mxu0 0.0
    %277 = vmatprep.subr.mxu0 0.0
    %278 = vmatpush1.msra.mxu0 0.0
    %279 = vmatprep.subr.mxu0 0.0
    %280 = vmatpush1.msra.mxu0 0.0
    %281 = vmatprep.subr.mxu0 0.0
    %282 = vmatpush1.msra.mxu0 0.0
    %283 = vmatprep.subr.mxu0 0.0
    %284 = vmatpush1.msra.mxu0 0.0
    %285 = vmatprep.subr.mxu0 0.0
    %286 = vmatpush1.msra.mxu0 0.0
    %287 = vmatprep.subr.mxu0 0.0
    %288 = vmatpush1.msra.mxu0 0.0
    %289 = vmatprep.subr.mxu0 0.0
    %290 = vmatpush1.msra.mxu0 0.0
    %291 = vmatprep.subr.mxu0 %v240
    %292 = vmatpush1.msra.mxu0 %v239
    %293 = vmatprep.subr.mxu0 0.0
    %294 = vmatpush2.msra.mxu0 0.0
    %295 = vmatprep.subr.mxu0 0.0
    %296 = vmatpush2.msra.mxu0 0.0
    %297 = vmatprep.subr.mxu0 0.0
    %298 = vmatpush2.msra.mxu0 0.0
    %299 = vmatprep.subr.mxu0 0.0
    %300 = vmatpush2.msra.mxu0 0.0
    %301 = vmatprep.subr.mxu0 0.0
    %302 = vmatpush2.msra.mxu0 0.0
    %303 = vmatprep.subr.mxu0 0.0
    %304 = vmatpush2.msra.mxu0 0.0
    %305 = vmatprep.subr.mxu0 0.0
    %306 = vmatpush2.msra.mxu0 0.0
    %307 = vmatprep.subr.mxu0 0.0
    %308 = vmatpush2.msra.mxu0 0.0
    %309 = vmatprep.subr.mxu0 0.0
    %310 = vmatpush2.msra.mxu0 0.0
    %311 = vmatprep.subr.mxu0 0.0
    %312 = vmatpush2.msra.mxu0 0.0
    %313 = vmatprep.subr.mxu0 0.0
    %314 = vmatpush2.msra.mxu0 0.0
    %315 = vmatprep.subr.mxu0 0.0
    %316 = vmatpush2.msra.mxu0 0.0
    %317 = vmatprep.subr.mxu0 0.0
    %318 = vmatpush2.msra.mxu0 0.0
    %319 = vmatprep.subr.mxu0 0.0
    %320 = vmatpush2.msra.mxu0 0.0
    %321 = vmatprep.subr.mxu0 0.0
    %322 = vmatpush2.msra.mxu0 0.0
    %323 = vmatprep.subr.mxu0 0.0
    %324 = vmatpush2.msra.mxu0 0.0
    %325 = vmatprep.mubr.f32.mxu0 0.0
    %326 = vmatmul.mubr.f32.gmra.mxu0 %v259
    %v327 = vpop.f32.mrf.mxu0
    %v328 = vadd.f32 %v248, %v327
    %v329 = vpop.f32.mrf.mxu0
    %v330 = vadd.f32 %v252, %v329
    %331 = vdwg.mxu0
    %332 = vmatprep.subr.mxu0 0.0
    %333 = vmatpush1.msra.mxu0 0.0
    %334 = vmatprep.subr.mxu0 0.0
    %335 = vmatpush1.msra.mxu0 0.0
    %336 = vmatprep.subr.mxu0 0.0
    %337 = vmatpush1.msra.mxu0 0.0
    %338 = vmatprep.subr.mxu0 0.0
    %339 = vmatpush1.msra.mxu0 0.0
    %340 = vmatprep.subr.mxu0 0.0
    %341 = vmatpush1.msra.mxu0 0.0
    %342 = vmatprep.subr.mxu0 0.0
    %343 = vmatpush1.msra.mxu0 0.0
    %344 = vmatprep.subr.mxu0 0.0
    %345 = vmatpush1.msra.mxu0 0.0
    %346 = vmatprep.subr.mxu0 0.0
    %347 = vmatpush1.msra.mxu0 0.0
    %348 = vmatprep.subr.mxu0 0.0
    %349 = vmatpush1.msra.mxu0 0.0
    %350 = vmatprep.subr.mxu0 0.0
    %351 = vmatpush1.msra.mxu0 0.0
    %352 = vmatprep.subr.mxu0 0.0
    %353 = vmatpush1.msra.mxu0 0.0
    %354 = vmatprep.subr.mxu0 0.0
    %355 = vmatpush1.msra.mxu0 0.0
    %356 = vmatprep.subr.mxu0 0.0
    %357 = vmatpush1.msra.mxu0 0.0
    %358 = vmatprep.subr.mxu0 0.0
    %359 = vmatpush1.msra.mxu0 0.0
    %360 = vmatprep.subr.mxu0 0.0
    %361 = vmatpush1.msra.mxu0 0.0
    %362 = vmatprep.subr.mxu0 0.0
    %363 = vmatpush1.msra.mxu0 %v241
    %364 = vmatprep.subr.mxu0 0.0
    %365 = vmatpush2.msra.mxu0 0.0
    %366 = vmatprep.subr.mxu0 0.0
    %367 = vmatpush2.msra.mxu0 0.0
    %368 = vmatprep.subr.mxu0 0.0
    %369 = vmatpush2.msra.mxu0 0.0
    %370 = vmatprep.subr.mxu0 0.0
    %371 = vmatpush2.msra.mxu0 0.0
    %372 = vmatprep.subr.mxu0 0.0
    %373 = vmatpush2.msra.mxu0 0.0
    %374 = vmatprep.subr.mxu0 0.0
    %375 = vmatpush2.msra.mxu0 0.0
    %376 = vmatprep.subr.mxu0 0.0
    %377 = vmatpush2.msra.mxu0 0.0
    %378 = vmatprep.subr.mxu0 0.0
    %379 = vmatpush2.msra.mxu0 0.0
    %380 = vmatprep.subr.mxu0 0.0
    %381 = vmatpush2.msra.mxu0 0.0
    %382 = vmatprep.subr.mxu0 0.0
    %383 = vmatpush2.msra.mxu0 0.0
    %384 = vmatprep.subr.mxu0 0.0
    %385 = vmatpush2.msra.mxu0 0.0
    %386 = vmatprep.subr.mxu0 0.0
    %387 = vmatpush2.msra.mxu0 0.0
    %388 = vmatprep.subr.mxu0 0.0
    %389 = vmatpush2.msra.mxu0 0.0
    %390 = vmatprep.subr.mxu0 0.0
    %391 = vmatpush2.msra.mxu0 0.0
    %392 = vmatprep.subr.mxu0 0.0
    %393 = vmatpush2.msra.mxu0 0.0
    %394 = vmatprep.subr.mxu0 0.0
    %395 = vmatpush2.msra.mxu0 0.0
    %396 = vmatprep.mubr.f32.mxu0 0.0
    %397 = vmatmul.mubr.f32.gmra.mxu0 %v259
    %v398 = vpop.f32.mrf.mxu0
    %v399 = vadd.f32 %v256, %v398
    %v400 = vpop.f32.mrf.mxu0
    %401 = vdwg.mxu0
    %vm402 = vcmp.gt.f32.partialorder %v399, 0.0
    %v403 = vmul.f32 %v399, 0.01
    %v404 = vsel %vm402, %v399, %v403
    %v405 = vld [vmem:[#allocation5] sm:$0xff]
    %v406 = vld [vmem:[#allocation5 + $0x8] sm:$0xff]
    %v407 = vld [vmem:[#allocation5 + $0x10] sm:$0xff]
    %v408 = vld [vmem:[#allocation5 + $0x18] sm:$0xff]
    %v409 = vld [vmem:[#allocation5 + $0x20] sm:$0xff]
    %v410 = vld [vmem:[#allocation5 + $0x28] sm:$0xff]
    %v411 = vld [vmem:[#allocation5 + $0x30] sm:$0xff]
    %v412 = vld [vmem:[#allocation5 + $0x38] sm:$0xff]
    %v413 = vld [vmem:[#allocation5 + $0x40] sm:$0xff]
    %v414 = vld [vmem:[#allocation5 + $0x48] sm:$0xff]
    %v415 = vld [vmem:[#allocation5 + $0x50] sm:$0xff]
    %v416 = vld [vmem:[#allocation5 + $0x58] sm:$0xff]
    %v417 = vld [vmem:[#allocation5 + $0x60] sm:$0xff]
    %v418 = vld [vmem:[#allocation5 + $0x68] sm:$0xff]
    %v419 = vld [vmem:[#allocation5 + $0x70] sm:$0xff]
    %v420 = vld [vmem:[#allocation5 + $0x78] sm:$0xff]
    %v421 = vld [vmem:[#allocation5 + $0x80] sm:$0xff]
    %v422 = vld [vmem:[#allocation5 + $0x88] sm:$0xff]
    %v423 = vld [vmem:[#allocation5 + $0x90] sm:$0xff]
    %v424 = vld [vmem:[#allocation5 + $0x98] sm:$0xff]
    %v425 = vld [vmem:[#allocation5 + $0xa0] sm:$0xff]
    %v426 = vld [vmem:[#allocation5 + $0xa8] sm:$0xff]
    %v427 = vld [vmem:[#allocation5 + $0xb0] sm:$0xff]
    %v428 = vld [vmem:[#allocation5 + $0xb8] sm:$0xff]
    %v429 = vld [vmem:[#allocation5 + $0xc0] sm:$0xff]
    %v430 = vld [vmem:[#allocation5 + $0xc8] sm:$0xff]
    %v431 = vld [vmem:[#allocation5 + $0xd0] sm:$0xff]
    %v432 = vld [vmem:[#allocation5 + $0xd8] sm:$0xff]
    %v433 = vld [vmem:[#allocation5 + $0xe0] sm:$0xff]
    %v434 = vld [vmem:[#allocation5 + $0xe8] sm:$0xff]
    %v435 = vld [vmem:[#allocation5 + $0xf0] sm:$0xff]
    %v436 = vld [vmem:[#allocation5 + $0xf8] sm:$0xff]
    %v437 = vld [vmem:[#allocation5 + $0x100] sm:$0xff]
    %v438 = vld [vmem:[#allocation5 + $0x108] sm:$0xff]
    %v439 = vld [vmem:[#allocation5 + $0x110] sm:$0xff]
    %v440 = vld [vmem:[#allocation5 + $0x118] sm:$0xff]
    %v441 = vld [vmem:[#allocation5 + $0x120] sm:$0xff]
    %v442 = vld [vmem:[#allocation5 + $0x128] sm:$0xff]
    %v443 = vld [vmem:[#allocation5 + $0x130] sm:$0xff]
    %v444 = vld [vmem:[#allocation5 + $0x138] sm:$0xff]
    %v445 = vld [vmem:[#allocation5 + $0x140] sm:$0xff]
    %v446 = vld [vmem:[#allocation5 + $0x148] sm:$0xff]
    %v447 = vld [vmem:[#allocation5 + $0x150] sm:$0xff]
    %v448 = vld [vmem:[#allocation5 + $0x158] sm:$0xff]
    %v449 = vld [vmem:[#allocation5 + $0x160] sm:$0xff]
    %v450 = vld [vmem:[#allocation5 + $0x168] sm:$0xff]
    %v451 = vld [vmem:[#allocation5 + $0x170] sm:$0xff]
    %v452 = vld [vmem:[#allocation5 + $0x178] sm:$0xff]
    %v453 = vld [vmem:[#allocation5 + $0x180] sm:$0xff]
    %v454 = vld [vmem:[#allocation5 + $0x188] sm:$0xff]
    %v455 = vld [vmem:[#allocation5 + $0x190] sm:$0xff]
    %v456 = vld [vmem:[#allocation5 + $0x198] sm:$0xff]
    %v457 = vld [vmem:[#allocation5 + $0x1a0] sm:$0xff]
    %v458 = vld [vmem:[#allocation5 + $0x1a8] sm:$0xff]
    %v459 = vld [vmem:[#allocation5 + $0x1b0] sm:$0xff]
    %v460 = vld [vmem:[#allocation5 + $0x1b8] sm:$0xff]
    %v461 = vld [vmem:[#allocation5 + $0x1c0] sm:$0xff]
    %v462 = vld [vmem:[#allocation5 + $0x1c8] sm:$0xff]
    %v463 = vld [vmem:[#allocation5 + $0x1d0] sm:$0xff]
    %v464 = vld [vmem:[#allocation5 + $0x1d8] sm:$0xff]
    %v465 = vld [vmem:[#allocation5 + $0x1e0] sm:$0xff]
    %v466 = vld [vmem:[#allocation5 + $0x1e8] sm:$0xff]
    %v467 = vld [vmem:[#allocation5 + $0x1f0] sm:$0xff]
    %v468 = vld [vmem:[#allocation5 + $0x1f8] sm:$0xff]
    %v469 = vld [vmem:[#allocation5 + $0x200] sm:$0xff]
    %v470 = vld [vmem:[#allocation5 + $0x208] sm:$0xff]
    %v471 = vld [vmem:[#allocation5 + $0x210] sm:$0xff]
    %v472 = vld [vmem:[#allocation5 + $0x218] sm:$0xff]
    %v473 = vld [vmem:[#allocation5 + $0x220] sm:$0xff]
    %v474 = vld [vmem:[#allocation5 + $0x228] sm:$0xff]
    %v475 = vld [vmem:[#allocation5 + $0x230] sm:$0xff]
    %v476 = vld [vmem:[#allocation5 + $0x238] sm:$0xff]
    %v477 = vld [vmem:[#allocation5 + $0x240] sm:$0xff]
    %v478 = vld [vmem:[#allocation5 + $0x248] sm:$0xff]
    %v479 = vld [vmem:[#allocation5 + $0x250] sm:$0xff]
    %v480 = vld [vmem:[#allocation5 + $0x258] sm:$0xff]
    %v481 = vld [vmem:[#allocation5 + $0x260] sm:$0xff]
    %v482 = vld [vmem:[#allocation5 + $0x268] sm:$0xff]
    %v483 = vld [vmem:[#allocation5 + $0x270] sm:$0xff]
    %v484 = vld [vmem:[#allocation5 + $0x278] sm:$0xff]
    %v485 = vld [vmem:[#allocation5 + $0x280] sm:$0xff]
    %v486 = vld [vmem:[#allocation5 + $0x288] sm:$0xff]
    %v487 = vld [vmem:[#allocation5 + $0x290] sm:$0xff]
    %v488 = vld [vmem:[#allocation5 + $0x298] sm:$0xff]
    %v489 = vld [vmem:[#allocation5 + $0x2a0] sm:$0xff]
    %v490 = vld [vmem:[#allocation5 + $0x2a8] sm:$0xff]
    %v491 = vld [vmem:[#allocation5 + $0x2b0] sm:$0xff]
    %v492 = vld [vmem:[#allocation5 + $0x2b8] sm:$0xff]
    %v493 = vld [vmem:[#allocation5 + $0x2c0] sm:$0xff]
    %v494 = vld [vmem:[#allocation5 + $0x2c8] sm:$0xff]
    %v495 = vld [vmem:[#allocation5 + $0x2d0] sm:$0xff]
    %v496 = vld [vmem:[#allocation5 + $0x2d8] sm:$0xff]
    %v497 = vld [vmem:[#allocation5 + $0x2e0] sm:$0xff]
    %v498 = vld [vmem:[#allocation5 + $0x2e8] sm:$0xff]
    %v499 = vld [vmem:[#allocation5 + $0x2f0] sm:$0xff]
    %v500 = vld [vmem:[#allocation5 + $0x2f8] sm:$0xff]
    %v501 = vld [vmem:[#allocation5 + $0x300] sm:$0xff]
    %v502 = vld [vmem:[#allocation5 + $0x308] sm:$0xff]
    %v503 = vld [vmem:[#allocation5 + $0x310] sm:$0xff]
    %v504 = vld [vmem:[#allocation5 + $0x318] sm:$0xff]
    %v505 = vld [vmem:[#allocation5 + $0x320] sm:$0xff]
    %v506 = vld [vmem:[#allocation5 + $0x328] sm:$0xff]
    %v507 = vld [vmem:[#allocation5 + $0x330] sm:$0xff]
    %v508 = vld [vmem:[#allocation5 + $0x338] sm:$0xff]
    %v509 = vld [vmem:[#allocation5 + $0x340] sm:$0xff]
    %v510 = vld [vmem:[#allocation5 + $0x348] sm:$0xff]
    %v511 = vld [vmem:[#allocation5 + $0x350] sm:$0xff]
    %v512 = vld [vmem:[#allocation5 + $0x358] sm:$0xff]
    %v513 = vld [vmem:[#allocation5 + $0x360] sm:$0xff]
    %v514 = vld [vmem:[#allocation5 + $0x368] sm:$0xff]
    %v515 = vld [vmem:[#allocation5 + $0x370] sm:$0xff]
    %v516 = vld [vmem:[#allocation5 + $0x378] sm:$0xff]
    %v517 = vld [vmem:[#allocation5 + $0x380] sm:$0xff]
    %v518 = vld [vmem:[#allocation5 + $0x388] sm:$0xff]
    %v519 = vld [vmem:[#allocation5 + $0x390] sm:$0xff]
    %v520 = vld [vmem:[#allocation5 + $0x398] sm:$0xff]
    %v521 = vld [vmem:[#allocation5 + $0x3a0] sm:$0xff]
    %v522 = vld [vmem:[#allocation5 + $0x3a8] sm:$0xff]
    %v523 = vld [vmem:[#allocation5 + $0x3b0] sm:$0xff]
    %v524 = vld [vmem:[#allocation5 + $0x3b8] sm:$0xff]
    %v525 = vld [vmem:[#allocation5 + $0x3c0] sm:$0xff]
    %v526 = vld [vmem:[#allocation5 + $0x3c8] sm:$0xff]
    %v527 = vld [vmem:[#allocation5 + $0x3d0] sm:$0xff]
    %v528 = vld [vmem:[#allocation5 + $0x3d8] sm:$0xff]
    %v529 = vld [vmem:[#allocation5 + $0x3e0] sm:$0xff]
    %v530 = vld [vmem:[#allocation5 + $0x3e8] sm:$0xff]
    %v531 = vld [vmem:[#allocation5 + $0x3f0] sm:$0xff]
    %v532 = vld [vmem:[#allocation5 + $0x3f8] sm:$0xff]
    %v533 = vlaneseq
    %v534 = vshrl.u32 %v533, 7
    %v535 = vsub.s32 4, %v534
    %v536 = vrot.slane %v113, %v535
    %537 = vmatprep.subr.mxu0 0.0
    %538 = vmatpush1.msra.mxu0 %v420
    %539 = vmatprep.subr.mxu0 0.0
    %540 = vmatpush1.msra.mxu0 %v419
    %541 = vmatprep.subr.mxu0 0.0
    %542 = vmatpush1.msra.mxu0 %v418
    %543 = vmatprep.subr.mxu0 0.0
    %544 = vmatpush1.msra.mxu0 %v417
    %545 = vmatprep.subr.mxu0 0.0
    %546 = vmatpush1.msra.mxu0 %v416
    %547 = vmatprep.subr.mxu0 0.0
    %548 = vmatpush1.msra.mxu0 %v415
    %549 = vmatprep.subr.mxu0 0.0
    %550 = vmatpush1.msra.mxu0 %v414
    %551 = vmatprep.subr.mxu0 0.0
    %552 = vmatpush1.msra.mxu0 %v413
    %553 = vmatprep.subr.mxu0 0.0
    %554 = vmatpush1.msra.mxu0 %v412
    %555 = vmatprep.subr.mxu0 0.0
    %556 = vmatpush1.msra.mxu0 %v411
    %557 = vmatprep.subr.mxu0 0.0
    %558 = vmatpush1.msra.mxu0 %v410
    %559 = vmatprep.subr.mxu0 0.0
    %560 = vmatpush1.msra.mxu0 %v409
    %561 = vmatprep.subr.mxu0 0.0
    %562 = vmatpush1.msra.mxu0 %v408
    %563 = vmatprep.subr.mxu0 0.0
    %564 = vmatpush1.msra.mxu0 %v407
    %565 = vmatprep.subr.mxu0 0.0
    %566 = vmatpush1.msra.mxu0 %v406
    %567 = vmatprep.subr.mxu0 0.0
    %568 = vmatpush1.msra.mxu0 %v405
    %569 = vmatprep.subr.mxu0 0.0
    %570 = vmatpush2.msra.mxu0 %v436
    %571 = vmatprep.subr.mxu0 0.0
    %572 = vmatpush2.msra.mxu0 %v435
    %573 = vmatprep.subr.mxu0 0.0
    %574 = vmatpush2.msra.mxu0 %v434
    %575 = vmatprep.subr.mxu0 0.0
    %576 = vmatpush2.msra.mxu0 %v433
    %577 = vmatprep.subr.mxu0 0.0
    %578 = vmatpush2.msra.mxu0 %v432
    %579 = vmatprep.subr.mxu0 0.0
    %580 = vmatpush2.msra.mxu0 %v431
    %581 = vmatprep.subr.mxu0 0.0
    %582 = vmatpush2.msra.mxu0 %v430
    %583 = vmatprep.subr.mxu0 0.0
    %584 = vmatpush2.msra.mxu0 %v429
    %585 = vmatprep.subr.mxu0 0.0
    %586 = vmatpush2.msra.mxu0 %v428
    %587 = vmatprep.subr.mxu0 0.0
    %588 = vmatpush2.msra.mxu0 %v427
    %589 = vmatprep.subr.mxu0 0.0
    %590 = vmatpush2.msra.mxu0 %v426
    %591 = vmatprep.subr.mxu0 0.0
    %592 = vmatpush2.msra.mxu0 %v425
    %593 = vmatprep.subr.mxu0 0.0
    %594 = vmatpush2.msra.mxu0 %v424
    %595 = vmatprep.subr.mxu0 0.0
    %596 = vmatpush2.msra.mxu0 %v423
    %597 = vmatprep.subr.mxu0 0.0
    %598 = vmatpush2.msra.mxu0 %v422
    %599 = vmatprep.subr.mxu0 0.0
    %600 = vmatpush2.msra.mxu0 %v421
    %601 = vmatprep.mubr.f32.mxu0 %v105
    %602 = vmatmul.mubr.f32.gmra.mxu0 %v104
    %v603 = vpop.f32.mrf.mxu0
    %v604 = vadd.f32 %v536, %v603
    %v605 = vpop.f32.mrf.mxu0
    %606 = vdwg.mxu0
    %607 = vmatprep.subr.mxu0 0.0
    %608 = vmatpush1.msra.mxu0 %v452
    %609 = vmatprep.subr.mxu0 0.0
    %610 = vmatpush1.msra.mxu0 %v451
    %611 = vmatprep.subr.mxu0 0.0
    %612 = vmatpush1.msra.mxu0 %v450
    %613 = vmatprep.subr.mxu0 0.0
    %614 = vmatpush1.msra.mxu0 %v449
    %615 = vmatprep.subr.mxu0 0.0
    %616 = vmatpush1.msra.mxu0 %v448
    %617 = vmatprep.subr.mxu0 0.0
    %618 = vmatpush1.msra.mxu0 %v447
    %619 = vmatprep.subr.mxu0 0.0
    %620 = vmatpush1.msra.mxu0 %v446
    %621 = vmatprep.subr.mxu0 0.0
    %622 = vmatpush1.msra.mxu0 %v445
    %623 = vmatprep.subr.mxu0 0.0
    %624 = vmatpush1.msra.mxu0 %v444
    %625 = vmatprep.subr.mxu0 0.0
    %626 = vmatpush1.msra.mxu0 %v443
    %627 = vmatprep.subr.mxu0 0.0
    %628 = vmatpush1.msra.mxu0 %v442
    %629 = vmatprep.subr.mxu0 0.0
    %630 = vmatpush1.msra.mxu0 %v441
    %631 = vmatprep.subr.mxu0 0.0
    %632 = vmatpush1.msra.mxu0 %v440
    %633 = vmatprep.subr.mxu0 0.0
    %634 = vmatpush1.msra.mxu0 %v439
    %635 = vmatprep.subr.mxu0 0.0
    %636 = vmatpush1.msra.mxu0 %v438
    %637 = vmatprep.subr.mxu0 0.0
    %638 = vmatpush1.msra.mxu0 %v437
    %639 = vmatprep.subr.mxu0 0.0
    %640 = vmatpush2.msra.mxu0 %v468
    %641 = vmatprep.subr.mxu0 0.0
    %642 = vmatpush2.msra.mxu0 %v467
    %643 = vmatprep.subr.mxu0 0.0
    %644 = vmatpush2.msra.mxu0 %v466
    %645 = vmatprep.subr.mxu0 0.0
    %646 = vmatpush2.msra.mxu0 %v465
    %647 = vmatprep.subr.mxu0 0.0
    %648 = vmatpush2.msra.mxu0 %v464
    %649 = vmatprep.subr.mxu0 0.0
    %650 = vmatpush2.msra.mxu0 %v463
    %651 = vmatprep.subr.mxu0 0.0
    %652 = vmatpush2.msra.mxu0 %v462
    %653 = vmatprep.subr.mxu0 0.0
    %654 = vmatpush2.msra.mxu0 %v461
    %655 = vmatprep.subr.mxu0 0.0
    %656 = vmatpush2.msra.mxu0 %v460
    %657 = vmatprep.subr.mxu0 0.0
    %658 = vmatpush2.msra.mxu0 %v459
    %659 = vmatprep.subr.mxu0 0.0
    %660 = vmatpush2.msra.mxu0 %v458
    %661 = vmatprep.subr.mxu0 0.0
    %662 = vmatpush2.msra.mxu0 %v457
    %663 = vmatprep.subr.mxu0 0.0
    %664 = vmatpush2.msra.mxu0 %v456
    %665 = vmatprep.subr.mxu0 0.0
    %666 = vmatpush2.msra.mxu0 %v455
    %667 = vmatprep.subr.mxu0 0.0
    %668 = vmatpush2.msra.mxu0 %v454
    %669 = vmatprep.subr.mxu0 0.0
    %670 = vmatpush2.msra.mxu0 %v453
    %671 = vmatprep.mubr.f32.mxu0 %v107
    %672 = vmatmul.mubr.f32.gmra.mxu0 %v106
    %v673 = vpop.f32.mrf.mxu0
    %v674 = vadd.f32 %v604, %v673
    %v675 = vpop.f32.mrf.mxu0
    %676 = vdwg.mxu0
    %677 = vmatprep.subr.mxu0 0.0
    %678 = vmatpush1.msra.mxu0 %v484
    %679 = vmatprep.subr.mxu0 0.0
    %680 = vmatpush1.msra.mxu0 %v483
    %681 = vmatprep.subr.mxu0 0.0
    %682 = vmatpush1.msra.mxu0 %v482
    %683 = vmatprep.subr.mxu0 0.0
    %684 = vmatpush1.msra.mxu0 %v481
    %685 = vmatprep.subr.mxu0 0.0
    %686 = vmatpush1.msra.mxu0 %v480
    %687 = vmatprep.subr.mxu0 0.0
    %688 = vmatpush1.msra.mxu0 %v479
    %689 = vmatprep.subr.mxu0 0.0
    %690 = vmatpush1.msra.mxu0 %v478
    %691 = vmatprep.subr.mxu0 0.0
    %692 = vmatpush1.msra.mxu0 %v477
    %693 = vmatprep.subr.mxu0 0.0
    %694 = vmatpush1.msra.mxu0 %v476
    %695 = vmatprep.subr.mxu0 0.0
    %696 = vmatpush1.msra.mxu0 %v475
    %697 = vmatprep.subr.mxu0 0.0
    %698 = vmatpush1.msra.mxu0 %v474
    %699 = vmatprep.subr.mxu0 0.0
    %700 = vmatpush1.msra.mxu0 %v473
    %701 = vmatprep.subr.mxu0 0.0
    %702 = vmatpush1.msra.mxu0 %v472
    %703 = vmatprep.subr.mxu0 0.0
    %704 = vmatpush1.msra.mxu0 %v471
    %705 = vmatprep.subr.mxu0 0.0
    %706 = vmatpush1.msra.mxu0 %v470
    %707 = vmatprep.subr.mxu0 0.0
    %708 = vmatpush1.msra.mxu0 %v469
    %709 = vmatprep.subr.mxu0 0.0
    %710 = vmatpush2.msra.mxu0 %v500
    %711 = vmatprep.subr.mxu0 0.0
    %712 = vmatpush2.msra.mxu0 %v499
    %713 = vmatprep.subr.mxu0 0.0
    %714 = vmatpush2.msra.mxu0 %v498
    %715 = vmatprep.subr.mxu0 0.0
    %716 = vmatpush2.msra.mxu0 %v497
    %717 = vmatprep.subr.mxu0 0.0
    %718 = vmatpush2.msra.mxu0 %v496
    %719 = vmatprep.subr.mxu0 0.0
    %720 = vmatpush2.msra.mxu0 %v495
    %721 = vmatprep.subr.mxu0 0.0
    %722 = vmatpush2.msra.mxu0 %v494
    %723 = vmatprep.subr.mxu0 0.0
    %724 = vmatpush2.msra.mxu0 %v493
    %725 = vmatprep.subr.mxu0 0.0
    %726 = vmatpush2.msra.mxu0 %v492
    %727 = vmatprep.subr.mxu0 0.0
    %728 = vmatpush2.msra.mxu0 %v491
    %729 = vmatprep.subr.mxu0 0.0
    %730 = vmatpush2.msra.mxu0 %v490
    %731 = vmatprep.subr.mxu0 0.0
    %732 = vmatpush2.msra.mxu0 %v489
    %733 = vmatprep.subr.mxu0 0.0
    %734 = vmatpush2.msra.mxu0 %v488
    %735 = vmatprep.subr.mxu0 0.0
    %736 = vmatpush2.msra.mxu0 %v487
    %737 = vmatprep.subr.mxu0 0.0
    %738 = vmatpush2.msra.mxu0 %v486
    %739 = vmatprep.subr.mxu0 0.0
    %740 = vmatpush2.msra.mxu0 %v485
    %741 = vmatprep.mubr.f32.mxu0 %v109
    %742 = vmatmul.mubr.f32.gmra.mxu0 %v108
    %v743 = vpop.f32.mrf.mxu0
    %v744 = vadd.f32 %v674, %v743
    %v745 = vpop.f32.mrf.mxu0
    %746 = vdwg.mxu0
    %747 = vmatprep.subr.mxu0 0.0
    %748 = vmatpush1.msra.mxu0 %v516
    %749 = vmatprep.subr.mxu0 0.0
    %750 = vmatpush1.msra.mxu0 %v515
    %751 = vmatprep.subr.mxu0 0.0
    %752 = vmatpush1.msra.mxu0 %v514
    %753 = vmatprep.subr.mxu0 0.0
    %754 = vmatpush1.msra.mxu0 %v513
    %755 = vmatprep.subr.mxu0 0.0
    %756 = vmatpush1.msra.mxu0 %v512
    %757 = vmatprep.subr.mxu0 0.0
    %758 = vmatpush1.msra.mxu0 %v511
    %759 = vmatprep.subr.mxu0 0.0
    %760 = vmatpush1.msra.mxu0 %v510
    %761 = vmatprep.subr.mxu0 0.0
    %762 = vmatpush1.msra.mxu0 %v509
    %763 = vmatprep.subr.mxu0 0.0
    %764 = vmatpush1.msra.mxu0 %v508
    %765 = vmatprep.subr.mxu0 0.0
    %766 = vmatpush1.msra.mxu0 %v507
    %767 = vmatprep.subr.mxu0 0.0
    %768 = vmatpush1.msra.mxu0 %v506
    %769 = vmatprep.subr.mxu0 0.0
    %770 = vmatpush1.msra.mxu0 %v505
    %771 = vmatprep.subr.mxu0 0.0
    %772 = vmatpush1.msra.mxu0 %v504
    %773 = vmatprep.subr.mxu0 0.0
    %774 = vmatpush1.msra.mxu0 %v503
    %775 = vmatprep.subr.mxu0 0.0
    %776 = vmatpush1.msra.mxu0 %v502
    %777 = vmatprep.subr.mxu0 0.0
    %778 = vmatpush1.msra.mxu0 %v501
    %779 = vmatprep.subr.mxu0 0.0
    %780 = vmatpush2.msra.mxu0 %v532
    %781 = vmatprep.subr.mxu0 0.0
    %782 = vmatpush2.msra.mxu0 %v531
    %783 = vmatprep.subr.mxu0 0.0
    %784 = vmatpush2.msra.mxu0 %v530
    %785 = vmatprep.subr.mxu0 0.0
    %786 = vmatpush2.msra.mxu0 %v529
    %787 = vmatprep.subr.mxu0 0.0
    %788 = vmatpush2.msra.mxu0 %v528
    %789 = vmatprep.subr.mxu0 0.0
    %790 = vmatpush2.msra.mxu0 %v527
    %791 = vmatprep.subr.mxu0 0.0
    %792 = vmatpush2.msra.mxu0 %v526
    %793 = vmatprep.subr.mxu0 0.0
    %794 = vmatpush2.msra.mxu0 %v525
    %795 = vmatprep.subr.mxu0 0.0
    %796 = vmatpush2.msra.mxu0 %v524
    %797 = vmatprep.subr.mxu0 0.0
    %798 = vmatpush2.msra.mxu0 %v523
    %799 = vmatprep.subr.mxu0 0.0
    %800 = vmatpush2.msra.mxu0 %v522
    %801 = vmatprep.subr.mxu0 0.0
    %802 = vmatpush2.msra.mxu0 %v521
    %803 = vmatprep.subr.mxu0 0.0
    %804 = vmatpush2.msra.mxu0 %v520
    %805 = vmatprep.subr.mxu0 0.0
    %806 = vmatpush2.msra.mxu0 %v519
    %807 = vmatprep.subr.mxu0 0.0
    %808 = vmatpush2.msra.mxu0 %v518
    %809 = vmatprep.subr.mxu0 0.0
    %810 = vmatpush2.msra.mxu0 %v517
    %811 = vmatprep.mubr.f32.mxu0 %v111
    %812 = vmatmul.mubr.f32.gmra.mxu0 %v110
    %v813 = vpop.f32.mrf.mxu0
    %v814 = vadd.f32 %v744, %v813
    %v815 = vpop.f32.mrf.mxu0
    %816 = vdwg.mxu0
    %818 = vset.pattern.permute.xlu0 0
    %819 = vperm.xlu0 %818, %v404
    %v820 = vpop.permute.xlu0 %819
    %v822 = vlaneseq
    %v823 = vshrl.u32 %v822, 7
    %v824 = vsub.s32 5, %v823
    %v825 = vrot.slane %v113, %v824
    %v826 = vmul.f32 %v820, %v825
    %v827 = vlaneseq
    %v828 = vshrl.u32 %v827, 7
    %v829 = vsub.s32 6, %v828
    %v830 = vrot.slane %v113, %v829
    %v831 = vadd.f32 %v826, %v830
    %832 = vset.pattern.permute.xlu0 1
    %833 = vperm.xlu0 %832, %v404
    %v834 = vpop.permute.xlu0 %833
    %v836 = vlaneseq
    %v837 = vshrl.u32 %v836, 7
    %v838 = vsub.s32 7, %v837
    %v839 = vrot.slane %v113, %v838
    %v840 = vmul.f32 %v834, %v839
    %v841 = vlaneseq
    %v842 = vshrl.u32 %v841, 7
    %v843 = vsub.s32 0, %v842
    %v844 = vrot.slane %v115, %v843
    %v845 = vadd.f32 %v840, %v844
    %vm846 = vcmp.gt.f32.partialorder %v814, %v831
    %v847 = vsub.f32 %v814, %v831
    %v848 = vmul.f32 %v845, %v847
    %v849 = vsel %vm846, %v847, %v848
    %v850 = vld [vmem:[#allocation7] sm:$0xff]
    %v851 = vld [vmem:[#allocation7 + $0x8] sm:$0xff]
    %v852 = vld [vmem:[#allocation7 + $0x10] sm:$0xff]
    %v853 = vld [vmem:[#allocation7 + $0x18] sm:$0xff]
    %v854 = vld [vmem:[#allocation7 + $0x20] sm:$0xff]
    %v855 = vld [vmem:[#allocation7 + $0x28] sm:$0xff]
    %v856 = vld [vmem:[#allocation7 + $0x30] sm:$0xff]
    %v857 = vld [vmem:[#allocation7 + $0x38] sm:$0xff]
    %v858 = vld [vmem:[#allocation7 + $0x40] sm:$0xff]
    %v859 = vld [vmem:[#allocation7 + $0x48] sm:$0xff]
    %v860 = vld [vmem:[#allocation7 + $0x50] sm:$0xff]
    %v861 = vld [vmem:[#allocation7 + $0x58] sm:$0xff]
    %v862 = vld [vmem:[#allocation7 + $0x60] sm:$0xff]
    %v863 = vld [vmem:[#allocation7 + $0x68] sm:$0xff]
    %v864 = vld [vmem:[#allocation7 + $0x70] sm:$0xff]
    %v865 = vld [vmem:[#allocation7 + $0x78] sm:$0xff]
    %v866 = vld [vmem:[#allocation7 + $0x80] sm:$0xff]
    %v867 = vld [vmem:[#allocation7 + $0x88] sm:$0xff]
    %v868 = vld [vmem:[#allocation7 + $0x90] sm:$0xff]
    %v869 = vld [vmem:[#allocation7 + $0x98] sm:$0xff]
    %v870 = vld [vmem:[#allocation7 + $0xa0] sm:$0xff]
    %v871 = vld [vmem:[#allocation7 + $0xa8] sm:$0xff]
    %v872 = vld [vmem:[#allocation7 + $0xb0] sm:$0xff]
    %v873 = vld [vmem:[#allocation7 + $0xb8] sm:$0xff]
    %v874 = vld [vmem:[#allocation7 + $0xc0] sm:$0xff]
    %v875 = vld [vmem:[#allocation7 + $0xc8] sm:$0xff]
    %v876 = vld [vmem:[#allocation7 + $0xd0] sm:$0xff]
    %v877 = vld [vmem:[#allocation7 + $0xd8] sm:$0xff]
    %v878 = vld [vmem:[#allocation7 + $0xe0] sm:$0xff]
    %v879 = vld [vmem:[#allocation7 + $0xe8] sm:$0xff]
    %v880 = vld [vmem:[#allocation7 + $0xf0] sm:$0xff]
    %v881 = vld [vmem:[#allocation7 + $0xf8] sm:$0xff]
    %882 = vmatprep.subr.mxu0 %v881
    %883 = vmatpush1.msra.mxu0 %v880
    %884 = vmatprep.subr.mxu0 %v879
    %885 = vmatpush1.msra.mxu0 %v878
    %886 = vmatprep.subr.mxu0 %v877
    %887 = vmatpush1.msra.mxu0 %v876
    %888 = vmatprep.subr.mxu0 %v875
    %889 = vmatpush1.msra.mxu0 %v874
    %890 = vmatprep.subr.mxu0 %v873
    %891 = vmatpush1.msra.mxu0 %v872
    %892 = vmatprep.subr.mxu0 %v871
    %893 = vmatpush1.msra.mxu0 %v870
    %894 = vmatprep.subr.mxu0 %v869
    %895 = vmatpush1.msra.mxu0 %v868
    %896 = vmatprep.subr.mxu0 %v867
    %897 = vmatpush1.msra.mxu0 %v866
    %898 = vmatprep.subr.mxu0 %v865
    %899 = vmatpush1.msra.mxu0 %v864
    %900 = vmatprep.subr.mxu0 %v863
    %901 = vmatpush1.msra.mxu0 %v862
    %902 = vmatprep.subr.mxu0 %v861
    %903 = vmatpush1.msra.mxu0 %v860
    %904 = vmatprep.subr.mxu0 %v859
    %905 = vmatpush1.msra.mxu0 %v858
    %906 = vmatprep.subr.mxu0 %v857
    %907 = vmatpush1.msra.mxu0 %v856
    %908 = vmatprep.subr.mxu0 %v855
    %909 = vmatpush1.msra.mxu0 %v854
    %910 = vmatprep.subr.mxu0 %v853
    %911 = vmatpush1.msra.mxu0 %v852
    %912 = vmatprep.subr.mxu0 %v851
    %913 = vmatpush1.msra.mxu0 %v850
    %914 = vmatprep.subr.mxu0 0.0
    %915 = vmatpush2.msra.mxu0 0.0
    %916 = vmatprep.subr.mxu0 0.0
    %917 = vmatpush2.msra.mxu0 0.0
    %918 = vmatprep.subr.mxu0 0.0
    %919 = vmatpush2.msra.mxu0 0.0
    %920 = vmatprep.subr.mxu0 0.0
    %921 = vmatpush2.msra.mxu0 0.0
    %922 = vmatprep.subr.mxu0 0.0
    %923 = vmatpush2.msra.mxu0 0.0
    %924 = vmatprep.subr.mxu0 0.0
    %925 = vmatpush2.msra.mxu0 0.0
    %926 = vmatprep.subr.mxu0 0.0
    %927 = vmatpush2.msra.mxu0 0.0
    %928 = vmatprep.subr.mxu0 0.0
    %929 = vmatpush2.msra.mxu0 0.0
    %930 = vmatprep.subr.mxu0 0.0
    %931 = vmatpush2.msra.mxu0 0.0
    %932 = vmatprep.subr.mxu0 0.0
    %933 = vmatpush2.msra.mxu0 0.0
    %934 = vmatprep.subr.mxu0 0.0
    %935 = vmatpush2.msra.mxu0 0.0
    %936 = vmatprep.subr.mxu0 0.0
    %937 = vmatpush2.msra.mxu0 0.0
    %938 = vmatprep.subr.mxu0 0.0
    %939 = vmatpush2.msra.mxu0 0.0
    %940 = vmatprep.subr.mxu0 0.0
    %941 = vmatpush2.msra.mxu0 0.0
    %942 = vmatprep.subr.mxu0 0.0
    %943 = vmatpush2.msra.mxu0 0.0
    %944 = vmatprep.subr.mxu0 0.0
    %945 = vmatpush2.msra.mxu0 0.0
    %946 = vmatprep.mubr.f32.mxu0 0.0
    %947 = vmatmul.mubr.f32.gmra.mxu0 %v849
    %v948 = vpop.f32.mrf.mxu0
    %v949 = vadd.f32 %v328, %v948
    %v950 = vpop.f32.mrf.mxu0
    %v951 = vadd.f32 %v330, %v950
    %952 = vdwg.mxu0
    %953 = vset.pattern.permute.xlu0 2
    %954 = vperm.xlu0 %953, %v404
    %v955 = vpop.permute.xlu0 %954
    %v957 = vlaneseq
    %v958 = vshrl.u32 %v957, 7
    %v959 = vsub.s32 0, %v958
    %v960 = vrot.slane %v113, %v959
    %v961 = vlaneseq
    %v962 = vshrl.u32 %v961, 7
    %v963 = vsub.s32 0, %v962
    %v964 = vrot.slane %v114, %v963
    %v965 = vmul.f32 %v955, %v960
    %v966 = vmul.f32 %v955, %v964
    %v967 = vlaneseq
    %v968 = vshrl.u32 %v967, 7
    %v969 = vsub.s32 1, %v968
    %v970 = vrot.slane %v113, %v969
    %v971 = vlaneseq
    %v972 = vshrl.u32 %v971, 7
    %v973 = vsub.s32 1, %v972
    %v974 = vrot.slane %v114, %v973
    %v975 = vadd.f32 %v965, %v970
    %v976 = vadd.f32 %v966, %v974
    %977 = vset.pattern.permute.xlu0 3
    %978 = vperm.xlu0 %977, %v404
    %v979 = vpop.permute.xlu0 %978
    %v981 = vlaneseq
    %v982 = vshrl.u32 %v981, 7
    %v983 = vsub.s32 2, %v982
    %v984 = vrot.slane %v113, %v983
    %v985 = vlaneseq
    %v986 = vshrl.u32 %v985, 7
    %v987 = vsub.s32 2, %v986
    %v988 = vrot.slane %v114, %v987
    %v989 = vmul.f32 %v979, %v984
    %v990 = vmul.f32 %v979, %v988
    %v991 = vlaneseq
    %v992 = vshrl.u32 %v991, 7
    %v993 = vsub.s32 3, %v992
    %v994 = vrot.slane %v113, %v993
    %v995 = vlaneseq
    %v996 = vshrl.u32 %v995, 7
    %v997 = vsub.s32 3, %v996
    %v998 = vrot.slane %v114, %v997
    %v999 = vadd.f32 %v989, %v994
    %v1000 = vadd.f32 %v990, %v998
    %vm1001 = vcmp.gt.f32.partialorder %v949, %v975
    %vm1002 = vcmp.gt.f32.partialorder %v951, %v976
    %v1003 = vsub.f32 %v949, %v975
    %v1004 = vsub.f32 %v951, %v976
    %v1005 = vmul.f32 %v999, %v1003
    %v1006 = vmul.f32 %v1000, %v1004
    %v1007 = vsel %vm1001, %v1003, %v1005
    %v1008 = vsel %vm1002, %v1004, %v1006
    %v1009 = vld [vmem:[#allocation11] sm:$0xff]
    %v1010 = vld [vmem:[#allocation11 + $0x8] sm:$0xff]
    %v1011 = vld [vmem:[#allocation11 + $0x10] sm:$0xff]
    %v1012 = vld [vmem:[#allocation11 + $0x18] sm:$0xff]
    %v1013 = vld [vmem:[#allocation11 + $0x20] sm:$0xff]
    %v1014 = vld [vmem:[#allocation11 + $0x28] sm:$0xff]
    %v1015 = vld [vmem:[#allocation11 + $0x30] sm:$0xff]
    %v1016 = vld [vmem:[#allocation11 + $0x38] sm:$0xff]
    %v1017 = vld [vmem:[#allocation11 + $0x40] sm:$0xff]
    %v1018 = vld [vmem:[#allocation11 + $0x48] sm:$0xff]
    %v1019 = vld [vmem:[#allocation11 + $0x50] sm:$0xff]
    %v1020 = vld [vmem:[#allocation11 + $0x58] sm:$0xff]
    %v1021 = vld [vmem:[#allocation11 + $0x60] sm:$0xff]
    %v1022 = vld [vmem:[#allocation11 + $0x68] sm:$0xff]
    %v1023 = vld [vmem:[#allocation11 + $0x70] sm:$0xff]
    %v1024 = vld [vmem:[#allocation11 + $0x78] sm:$0xff]
    %v1025 = vld [vmem:[#allocation11 + $0x80] sm:$0xff]
    %v1026 = vld [vmem:[#allocation11 + $0x88] sm:$0xff]
    %v1027 = vld [vmem:[#allocation11 + $0x90] sm:$0xff]
    %v1028 = vld [vmem:[#allocation11 + $0x98] sm:$0xff]
    %v1029 = vld [vmem:[#allocation11 + $0xa0] sm:$0xff]
    %v1030 = vld [vmem:[#allocation11 + $0xa8] sm:$0xff]
    %v1031 = vld [vmem:[#allocation11 + $0xb0] sm:$0xff]
    %v1032 = vld [vmem:[#allocation11 + $0xb8] sm:$0xff]
    %v1033 = vld [vmem:[#allocation11 + $0xc0] sm:$0xff]
    %v1034 = vld [vmem:[#allocation11 + $0xc8] sm:$0xff]
    %v1035 = vld [vmem:[#allocation11 + $0xd0] sm:$0xff]
    %v1036 = vld [vmem:[#allocation11 + $0xd8] sm:$0xff]
    %v1037 = vld [vmem:[#allocation11 + $0xe0] sm:$0xff]
    %v1038 = vld [vmem:[#allocation11 + $0xe8] sm:$0xff]
    %v1039 = vld [vmem:[#allocation11 + $0xf0] sm:$0xff]
    %v1040 = vld [vmem:[#allocation11 + $0xf8] sm:$0xff]
    %v1041 = vlaneseq
    %v1042 = vshrl.u32 %v1041, 7
    %v1043 = vsub.s32 1, %v1042
    %v1044 = vrot.slane %v115, %v1043
    %1045 = vmatprep.subr.mxu0 0.0
    %1046 = vmatpush1.msra.mxu0 %v1024
    %1047 = vmatprep.subr.mxu0 0.0
    %1048 = vmatpush1.msra.mxu0 %v1023
    %1049 = vmatprep.subr.mxu0 0.0
    %1050 = vmatpush1.msra.mxu0 %v1022
    %1051 = vmatprep.subr.mxu0 0.0
    %1052 = vmatpush1.msra.mxu0 %v1021
    %1053 = vmatprep.subr.mxu0 0.0
    %1054 = vmatpush1.msra.mxu0 %v1020
    %1055 = vmatprep.subr.mxu0 0.0
    %1056 = vmatpush1.msra.mxu0 %v1019
    %1057 = vmatprep.subr.mxu0 0.0
    %1058 = vmatpush1.msra.mxu0 %v1018
    %1059 = vmatprep.subr.mxu0 0.0
    %1060 = vmatpush1.msra.mxu0 %v1017
    %1061 = vmatprep.subr.mxu0 0.0
    %1062 = vmatpush1.msra.mxu0 %v1016
    %1063 = vmatprep.subr.mxu0 0.0
    %1064 = vmatpush1.msra.mxu0 %v1015
    %1065 = vmatprep.subr.mxu0 0.0
    %1066 = vmatpush1.msra.mxu0 %v1014
    %1067 = vmatprep.subr.mxu0 0.0
    %1068 = vmatpush1.msra.mxu0 %v1013
    %1069 = vmatprep.subr.mxu0 0.0
    %1070 = vmatpush1.msra.mxu0 %v1012
    %1071 = vmatprep.subr.mxu0 0.0
    %1072 = vmatpush1.msra.mxu0 %v1011
    %1073 = vmatprep.subr.mxu0 0.0
    %1074 = vmatpush1.msra.mxu0 %v1010
    %1075 = vmatprep.subr.mxu0 0.0
    %1076 = vmatpush1.msra.mxu0 %v1009
    %1077 = vmatprep.subr.mxu0 0.0
    %1078 = vmatpush2.msra.mxu0 %v1040
    %1079 = vmatprep.subr.mxu0 0.0
    %1080 = vmatpush2.msra.mxu0 %v1039
    %1081 = vmatprep.subr.mxu0 0.0
    %1082 = vmatpush2.msra.mxu0 %v1038
    %1083 = vmatprep.subr.mxu0 0.0
    %1084 = vmatpush2.msra.mxu0 %v1037
    %1085 = vmatprep.subr.mxu0 0.0
    %1086 = vmatpush2.msra.mxu0 %v1036
    %1087 = vmatprep.subr.mxu0 0.0
    %1088 = vmatpush2.msra.mxu0 %v1035
    %1089 = vmatprep.subr.mxu0 0.0
    %1090 = vmatpush2.msra.mxu0 %v1034
    %1091 = vmatprep.subr.mxu0 0.0
    %1092 = vmatpush2.msra.mxu0 %v1033
    %1093 = vmatprep.subr.mxu0 0.0
    %1094 = vmatpush2.msra.mxu0 %v1032
    %1095 = vmatprep.subr.mxu0 0.0
    %1096 = vmatpush2.msra.mxu0 %v1031
    %1097 = vmatprep.subr.mxu0 0.0
    %1098 = vmatpush2.msra.mxu0 %v1030
    %1099 = vmatprep.subr.mxu0 0.0
    %1100 = vmatpush2.msra.mxu0 %v1029
    %1101 = vmatprep.subr.mxu0 0.0
    %1102 = vmatpush2.msra.mxu0 %v1028
    %1103 = vmatprep.subr.mxu0 0.0
    %1104 = vmatpush2.msra.mxu0 %v1027
    %1105 = vmatprep.subr.mxu0 0.0
    %1106 = vmatpush2.msra.mxu0 %v1026
    %1107 = vmatprep.subr.mxu0 0.0
    %1108 = vmatpush2.msra.mxu0 %v1025
    %1109 = vmatprep.mubr.f32.mxu0 %v1008
    %1110 = vmatmul.mubr.f32.gmra.mxu0 %v1007
    %v1111 = vpop.f32.mrf.mxu0
    %v1112 = vadd.f32 %v1044, %v1111
    %v1113 = vpop.f32.mrf.mxu0
    %1114 = vdwg.mxu0
    %1115 = vst [vmem:[#allocation13] sm:$0xff] %v1112
    // Predicated region
    $region50: #{tpu_custom_call.1} parent=1 // pred_check
      _
    $region51: #{tpu_custom_call.1} parent=1 // pred_check_branch
      %1117 = sbr.rel (0) target = $region53
    $region52: #{tpu_custom_call.1} parent=1 // pred_region
      %s1119 = ssub.s32 128, 128
      %1120 = vsyncadd [#allocation4], %s1119
      %s1122 = sshll.u32 [#allocation13], 4
      %s1123 = int_to_ptr.vmem [resolvable:$true] %s1122
      %1125 = dma.vmem_to_hbm [thread:$0]  %s1123, 128, %s6, [#allocation4]
    $region53: #{tpu_custom_call.1} parent=1 // pred_fallthru
      _
    // Predicated region
    $region54: #{tpu_custom_call.1} parent=1 // pred_check
      _
    $region55: #{tpu_custom_call.1} parent=1 // pred_check_branch
      %1127 = sbr.rel (0) target = $region57
    $region56: #{tpu_custom_call.1} parent=1 // pred_region
      %1128 = dma.done [#allocation4], 128
    $region57: #{tpu_custom_call.1} parent=1 // pred_fallthru
      _
    %1129 = vsyncpa [#allocation3], 1
    %1130 = vsyncpa [#allocation6], 1
    %1131 = vsyncpa [#allocation9], 1
    %1132 = vsyncpa [#allocation12], 1
    %1133 = vsyncpa [#allocation4], 1

</llo_original>
